<compile_context>
chip_gen: v6e
topology: v6e:2x2x1
jax: 0.10.0
libtpu: 0.0.40
codegen_flags: <defaults>
</compile_context>

<pallas_src>
import functools

import jax
import jax.numpy as jnp
from jax.experimental import pallas as pl
from jax.experimental.pallas import tpu as pltpu


# ---------------------------------------------------------------------------
# Kernels (feature-major: batch on the 128-lane axis)
# ---------------------------------------------------------------------------
def _coupling_kernel_coupled_only(x_ref,                 # (data_dim, TILE_B)
                                  w1_ref, b1_ref,        # (2W, d_tilde), (2W, 1)
                                  w2_ref, b2_ref,        # (2W, 2W),      (2W, 1)
                                  w3_ref, b3_ref,        # (2*out, 2W),   (2*out, 1)
                                  out_ref,               # (out_dim, TILE_B)  <- coupled half only
                                  *, d_tilde, out_dim):
    f32 = jnp.float32
    x1 = x_ref[:d_tilde, :]                              # passthrough half (sublane slice)
    x2 = x_ref[d_tilde:, :]                              # coupled half

    w1 = w1_ref[...]; w2 = w2_ref[...]; w3 = w3_ref[...]
    # Fused (translation | scaling) MLP: one MXU matmul per layer, bf16 operands,
    # f32 accumulate.  Biases / ReLU / tanh / exp stay f32.
    h = jnp.dot(w1, x1.astype(w1.dtype), preferred_element_type=f32) + b1_ref[...]
    h = jnp.maximum(h, 0.0)
    h = jnp.dot(w2, h.astype(w2.dtype), preferred_element_type=f32) + b2_ref[...]
    h = jnp.maximum(h, 0.0)
    h = jnp.dot(w3, h.astype(w3.dtype), preferred_element_type=f32) + b3_ref[...]

    trans = h[:out_dim, :]
    scale = jnp.exp(jnp.tanh(h[out_dim:, :]))            # transcendentals -> EUP slot

    # Only the coupled half is stored; the passthrough half already lives in the
    # aliased output buffer (input_output_aliases={0: 0}).
    out_ref[...] = x2 * scale + trans


def _coupling_kernel_full(x_ref, w1_ref, b1_ref, w2_ref, b2_ref, w3_ref, b3_ref,
                          out_ref,                       # (data_dim, TILE_B)
                          *, d_tilde, out_dim):
    # Fallback for data_dim whose coupled half is not sublane-aligned: writes
    # both halves of a full output block (no aliasing trick).
    f32 = jnp.float32
    x1 = x_ref[:d_tilde, :]
    x2 = x_ref[d_tilde:, :]
    w1 = w1_ref[...]; w2 = w2_ref[...]; w3 = w3_ref[...]
    h = jnp.dot(w1, x1.astype(w1.dtype), preferred_element_type=f32) + b1_ref[...]
    h = jnp.maximum(h, 0.0)
    h = jnp.dot(w2, h.astype(w2.dtype), preferred_element_type=f32) + b2_ref[...]
    h = jnp.maximum(h, 0.0)
    h = jnp.dot(w3, h.astype(w3.dtype), preferred_element_type=f32) + b3_ref[...]
    trans = h[:out_dim, :]
    scale = jnp.exp(jnp.tanh(h[out_dim:, :]))
    out_ref[:d_tilde, :] = x1
    out_ref[d_tilde:, :] = x2 * scale + trans


# ---------------------------------------------------------------------------
# Weight packing (done ONCE, outside the forward; cache the result)
# ---------------------------------------------------------------------------
def pack_params(p, data_dim, width, *, matmul_dtype=jnp.bfloat16):
    """Fuse translation+scaling MLPs into one MLP (feature-major orientation).

    Weights are cast to `matmul_dtype` (bf16 by default) for the MXU; biases
    stay f32.  Layers 2/3 are block-diagonal so the two nets stay independent
    (do NOT split them back: 64x64 / 16x64 already fit one MXU weight tile).
    """
    d_tilde = data_dim // 2
    out_dim = data_dim - d_tilde
    f32 = jnp.float32

    w1 = jnp.concatenate([p["t_w1"].T, p["s_w1"].T], axis=0).astype(matmul_dtype)
    b1 = jnp.concatenate([p["t_b1"], p["s_b1"]], axis=1).T.astype(f32)      # (2W, 1)

    zww = jnp.zeros((width, width), f32)
    w2 = jnp.block([[p["t_w2"].T, zww], [zww, p["s_w2"].T]]).astype(matmul_dtype)
    b2 = jnp.concatenate([p["t_b2"], p["s_b2"]], axis=1).T.astype(f32)      # (2W, 1)

    zow = jnp.zeros((out_dim, width), f32)
    w3 = jnp.block([[p["t_w3"].T, zow], [zow, p["s_w3"].T]]).astype(matmul_dtype)
    b3 = jnp.concatenate([p["t_b3"], p["s_b3"]], axis=1).T.astype(f32)      # (2*out, 1)

    return (w1, b1, w2, b2, w3, b3)


# ---------------------------------------------------------------------------
# Tile selection (review: big tiles, v5e VMEM cap, v7x n_tiles >= 2..4)
# ---------------------------------------------------------------------------
def _choose_batch_tile(batch, tile_b):
    tile_b = max(128, min(int(tile_b), 32768))     # 32768 keeps v5e scoped VMEM safe
    if batch <= 256:
        # Tiny batch: one un-padded tile (lane dim == full array dim is legal).
        return batch, 1, batch
    # Target >= 4 grid steps so v7x's two TensorCores both get work.
    tb = min(tile_b, ((pl.cdiv(batch, 4) + 127) // 128) * 128)
    n_tiles = pl.cdiv(batch, tb)
    # Re-balance the tile to minimize padding (stays a multiple of 128, <= cap).
    tb = ((pl.cdiv(batch, n_tiles) + 127) // 128) * 128
    n_tiles = pl.cdiv(batch, tb)
    return tb, n_tiles, n_tiles * tb


# ---------------------------------------------------------------------------
# Feature-major forward (the real kernel entry point for a stacked flow)
# ---------------------------------------------------------------------------
def coupling_layer_forward_packed(x_fm, packed, *, tile_b=32768):
    """x_fm: (data_dim, B) f32, feature-major.  packed: output of pack_params.

    Returns (data_dim, B) f32, feature-major.  In a stacked flow keep all
    activations in this layout; no per-layer transposes are needed.
    """
    w1, b1, w2, b2, w3, b3 = packed
    data_dim, batch = x_fm.shape
    d_tilde = w1.shape[1]
    out_dim = w3.shape[0] // 2
    width = w2.shape[0] // 2
    assert d_tilde + out_dim == data_dim

    tb, n_tiles, b_pad = _choose_batch_tile(batch, tile_b)
    # Skip the pad copy entirely when the batch already divides into the tile.
    x_in = x_fm if b_pad == batch else jnp.pad(x_fm, ((0, 0), (0, b_pad - batch)))

    # Weights/biases: full-array blocks + constant index map -> resident in VMEM.
    def _resident(a):
        return pl.BlockSpec(a.shape, lambda i: (0, 0))

    x_spec = pl.BlockSpec((data_dim, tb), lambda i: (0, i))

    # Fast path: coupled half is a sublane-aligned row block -> alias the input
    # buffer to the output and only ever write rows [d_tilde:].
    fast = (d_tilde == out_dim) and (out_dim % 8 == 0)
    if fast:
        kernel = functools.partial(_coupling_kernel_coupled_only,
                                   d_tilde=d_tilde, out_dim=out_dim)
        out_spec = pl.BlockSpec((out_dim, tb), lambda i: (1, i))
        io_alias = {0: 0}
        out_bytes = 4 * b_pad * out_dim
    else:
        kernel = functools.partial(_coupling_kernel_full,
                                   d_tilde=d_tilde, out_dim=out_dim)
        out_spec = pl.BlockSpec((data_dim, tb), lambda i: (0, i))
        io_alias = {}
        out_bytes = 4 * b_pad * data_dim

    w_bytes = sum(int(a.size) * a.dtype.itemsize for a in (w1, b1, w2, b2, w3, b3))
    cost = pl.CostEstimate(
        flops=2 * b_pad * (d_tilde * 2 * width + (2 * width) ** 2
                           + 2 * width * 2 * out_dim),
        transcendentals=2 * b_pad * out_dim,                 # tanh + exp
        bytes_accessed=4 * b_pad * data_dim + out_bytes + w_bytes,
    )

    out = pl.pallas_call(
        kernel,
        out_shape=jax.ShapeDtypeStruct((data_dim, b_pad), x_fm.dtype),
        grid=(n_tiles,),
        in_specs=[
            x_spec,
            _resident(w1), _resident(b1),
            _resident(w2), _resident(b2),
            _resident(w3), _resident(b3),
        ],
        out_specs=out_spec,
        input_output_aliases=io_alias,
        compiler_params=pltpu.CompilerParams(
            dimension_semantics=("parallel",)),               # v7x: shard across 2 TCs
        cost_estimate=cost,
    )(x_in, w1, b1, w2, b2, w3, b3)

    return out if b_pad == batch else out[:, :batch]


# ---------------------------------------------------------------------------
# Init + pure-JAX references (for validation)
# ---------------------------------------------------------------------------
def _init_linear(key, fan_in, fan_out):
    """Deterministic init mimicking nn.Linear (uniform +-1/sqrt(fan_in))."""
    kw, kb = jax.random.split(key)
    bound = 1.0 / jnp.sqrt(jnp.float32(fan_in))
    w = jax.random.uniform(kw, (fan_in, fan_out), jnp.float32, -bound, bound)
    b = jax.random.uniform(kb, (1, fan_out), jnp.float32, -bound, bound)
    return w, b


def make_params(key, data_dim, width):
    d_tilde = data_dim // 2
    out_dim = data_dim - d_tilde
    keys = jax.random.split(key, 6)
    t_w1, t_b1 = _init_linear(keys[0], d_tilde, width)
    t_w2, t_b2 = _init_linear(keys[1], width, width)
    t_w3, t_b3 = _init_linear(keys[2], width, out_dim)
    s_w1, s_b1 = _init_linear(keys[3], d_tilde, width)
    s_w2, s_b2 = _init_linear(keys[4], width, width)
    s_w3, s_b3 = _init_linear(keys[5], width, out_dim)
    return dict(t_w1=t_w1, t_b1=t_b1, t_w2=t_w2, t_b2=t_b2, t_w3=t_w3, t_b3=t_b3,
                s_w1=s_w1, s_b1=s_b1, s_w2=s_w2, s_b2=s_b2, s_w3=s_w3, s_b3=s_b3)


def coupling_layer_reference(x, p, data_dim, matmul_dtype=jnp.float32):
    """Batch-major reference matching the PyTorch module's forward()."""
    d = data_dim // 2
    x1, x2 = x[:, :d], x[:, d:]

    def lin(h, w, b):
        return jnp.dot(h.astype(matmul_dtype), w.astype(matmul_dtype),
                       preferred_element_type=jnp.float32) + b

    def mlp(w1, b1, w2, b2, w3, b3):
        h = jnp.maximum(lin(x1, w1, b1), 0.0)
        h = jnp.maximum(lin(h, w2, b2), 0.0)
        return lin(h, w3, b3)

    t = mlp(p["t_w1"], p["t_b1"], p["t_w2"], p["t_b2"], p["t_w3"], p["t_b3"])
    s = jnp.exp(jnp.tanh(mlp(p["s_w1"], p["s_b1"], p["s_w2"], p["s_b2"],
                             p["s_w3"], p["s_b3"])))
    return jnp.concatenate([x1, x2 * s + t], axis=1)


if __name__ == "__main__":
    DATA_DIM = 16
    WIDTH = 32
    BATCH = 8

    key = jax.random.PRNGKey(0)
    k_x, k_p = jax.random.split(key)
    x = jax.random.normal(k_x, (BATCH, DATA_DIM), jnp.float32)
    params = make_params(k_p, DATA_DIM, WIDTH)

    # Pack once (per review) -- never inside the per-call forward.
    packed = pack_params(params, DATA_DIM, WIDTH)

    # A stacked flow keeps activations feature-major end to end; this transpose
    # is one-time model-boundary plumbing for the self-test only.
    x_fm = x.T
    fwd = jax.jit(coupling_layer_forward_packed, donate_argnums=(0,))
    out_fm = jax.block_until_ready(fwd(x_fm, packed))
    out = out_fm.T

    assert out.shape == (BATCH, DATA_DIM)
    # Tight check against a reference using the SAME precision recipe
    # (bf16 matmul operands, f32 accumulate) -- validates packing/slicing/aliasing.
    ref_same = coupling_layer_reference(x, params, DATA_DIM, matmul_dtype=jnp.bfloat16)
    assert jnp.allclose(out, ref_same, atol=2e-3, rtol=2e-3)
    # Looser sanity check against the exact f32 PyTorch-equivalent forward.
    ref_f32 = coupling_layer_reference(x, params, DATA_DIM)
    assert jnp.allclose(out, ref_f32, atol=1e-1, rtol=1e-1)

    print("KERNEL_OK")
</pallas_src>

<mosaic_0001>
module attributes {stable_mosaic.version = 11 : i64} {
  func.func @_coupling_kernel_coupled_only(%arg0: i32, %arg1: memref<16x8xf32, #tpu.memory_space<vmem>>, %arg2: memref<64x8xbf16, #tpu.memory_space<vmem>>, %arg3: memref<64x1xf32, #tpu.memory_space<vmem>>, %arg4: memref<64x64xbf16, #tpu.memory_space<vmem>>, %arg5: memref<64x1xf32, #tpu.memory_space<vmem>>, %arg6: memref<16x64xbf16, #tpu.memory_space<vmem>>, %arg7: memref<16x1xf32, #tpu.memory_space<vmem>>, %arg8: memref<8x8xf32, #tpu.memory_space<vmem>>) attributes {dimension_semantics = [#tpu.dimension_semantics<parallel>], iteration_bounds = array<i64: 1>, scalar_prefetch = 0 : i64, scratch_operands = 0 : i64, tpu.core_type = #tpu.core_type<tc>, window_params = [{transform_indices = @transform_0, window_bounds = array<i64: 16, 8>}, {pipeline_mode = #tpu.pipeline_mode<synchronous>, transform_indices = @transform_1, window_bounds = array<i64: 64, 8>}, {pipeline_mode = #tpu.pipeline_mode<synchronous>, transform_indices = @transform_2, window_bounds = array<i64: 64, 1>}, {pipeline_mode = #tpu.pipeline_mode<synchronous>, transform_indices = @transform_3, window_bounds = array<i64: 64, 64>}, {pipeline_mode = #tpu.pipeline_mode<synchronous>, transform_indices = @transform_4, window_bounds = array<i64: 64, 1>}, {pipeline_mode = #tpu.pipeline_mode<synchronous>, transform_indices = @transform_5, window_bounds = array<i64: 16, 64>}, {pipeline_mode = #tpu.pipeline_mode<synchronous>, transform_indices = @transform_6, window_bounds = array<i64: 16, 1>}, {transform_indices = @transform_7, window_bounds = array<i64: 8, 8>}]} {
    %c0 = arith.constant 0 : index
    %c0_0 = arith.constant 0 : index
    %0 = vector.load %arg1[%c0, %c0_0] : memref<16x8xf32, #tpu.memory_space<vmem>>, vector<8x8xf32>
    %c8 = arith.constant 8 : index
    %c0_1 = arith.constant 0 : index
    %1 = vector.load %arg1[%c8, %c0_1] : memref<16x8xf32, #tpu.memory_space<vmem>>, vector<8x8xf32>
    %c0_2 = arith.constant 0 : index
    %c0_3 = arith.constant 0 : index
    %2 = vector.load %arg2[%c0_2, %c0_3] : memref<64x8xbf16, #tpu.memory_space<vmem>>, vector<64x8xbf16>
    %c0_4 = arith.constant 0 : index
    %c0_5 = arith.constant 0 : index
    %3 = vector.load %arg4[%c0_4, %c0_5] : memref<64x64xbf16, #tpu.memory_space<vmem>>, vector<64x64xbf16>
    %c0_6 = arith.constant 0 : index
    %c0_7 = arith.constant 0 : index
    %4 = vector.load %arg6[%c0_6, %c0_7] : memref<16x64xbf16, #tpu.memory_space<vmem>>, vector<16x64xbf16>
    %5 = arith.truncf %0 : vector<8x8xf32> to vector<8x8xbf16>
    %cst = arith.constant dense<0.000000e+00> : vector<64x8xf32>
    %6 = tpu.matmul %2, %5, %cst {dimension_numbers = #tpu.dot_dimension_numbers<[1], [0], [0], [1], [0, 0, 1, 1], [], []>} : vector<64x8xbf16>, vector<8x8xbf16>, vector<64x8xf32> -> vector<64x8xf32>
    %c0_8 = arith.constant 0 : index
    %c0_9 = arith.constant 0 : index
    %7 = vector.load %arg3[%c0_8, %c0_9] : memref<64x1xf32, #tpu.memory_space<vmem>>, vector<64x1xf32>
    %8 = vector.broadcast %7 : vector<64x1xf32> to vector<64x8xf32>
    %9 = arith.addf %6, %8 : vector<64x8xf32>
    %cst_10 = arith.constant 0.000000e+00 : f32
    %10 = vector.broadcast %cst_10 : f32 to vector<64x8xf32>
    %11 = arith.maximumf %9, %10 : vector<64x8xf32>
    %12 = arith.truncf %11 : vector<64x8xf32> to vector<64x8xbf16>
    %cst_11 = arith.constant dense<0.000000e+00> : vector<64x8xf32>
    %13 = tpu.matmul %3, %12, %cst_11 {dimension_numbers = #tpu.dot_dimension_numbers<[1], [0], [0], [1], [0, 0, 1, 1], [], []>} : vector<64x64xbf16>, vector<64x8xbf16>, vector<64x8xf32> -> vector<64x8xf32>
    %c0_12 = arith.constant 0 : index
    %c0_13 = arith.constant 0 : index
    %14 = vector.load %arg5[%c0_12, %c0_13] : memref<64x1xf32, #tpu.memory_space<vmem>>, vector<64x1xf32>
    %15 = vector.broadcast %14 : vector<64x1xf32> to vector<64x8xf32>
    %16 = arith.addf %13, %15 : vector<64x8xf32>
    %cst_14 = arith.constant 0.000000e+00 : f32
    %17 = vector.broadcast %cst_14 : f32 to vector<64x8xf32>
    %18 = arith.maximumf %16, %17 : vector<64x8xf32>
    %19 = arith.truncf %18 : vector<64x8xf32> to vector<64x8xbf16>
    %cst_15 = arith.constant dense<0.000000e+00> : vector<16x8xf32>
    %20 = tpu.matmul %4, %19, %cst_15 {dimension_numbers = #tpu.dot_dimension_numbers<[1], [0], [0], [1], [0, 0, 1, 1], [], []>} : vector<16x64xbf16>, vector<64x8xbf16>, vector<16x8xf32> -> vector<16x8xf32>
    %c0_16 = arith.constant 0 : index
    %c0_17 = arith.constant 0 : index
    %21 = vector.load %arg7[%c0_16, %c0_17] : memref<16x1xf32, #tpu.memory_space<vmem>>, vector<16x1xf32>
    %22 = vector.broadcast %21 : vector<16x1xf32> to vector<16x8xf32>
    %23 = arith.addf %20, %22 : vector<16x8xf32>
    %24 = vector.extract_strided_slice %23 {offsets = [0, 0], sizes = [8, 8], strides = [1, 1]} : vector<16x8xf32> to vector<8x8xf32>
    %25 = vector.extract_strided_slice %23 {offsets = [8, 0], sizes = [8, 8], strides = [1, 1]} : vector<16x8xf32> to vector<8x8xf32>
    %26 = math.tanh %25 : vector<8x8xf32>
    %27 = math.exp %26 : vector<8x8xf32>
    %28 = arith.mulf %1, %27 : vector<8x8xf32>
    %29 = arith.addf %28, %24 : vector<8x8xf32>
    %c0_18 = arith.constant 0 : index
    %c0_19 = arith.constant 0 : index
    %30 = vector.load %arg8[%c0_18, %c0_19] : memref<8x8xf32, #tpu.memory_space<vmem>>, vector<8x8xf32>
    tpu.vector_store %arg8[%c0_18, %c0_19], %29 {strides = array<i32>} : memref<8x8xf32, #tpu.memory_space<vmem>>, vector<8x8xf32>,
    return
  }
  func.func @transform_0(%arg0: i32) -> (i32, i32) {
    %c0_i32 = arith.constant 0 : i32
    %c0_i32_0 = arith.constant 0 : i32
    return %c0_i32, %arg0 : i32, i32
  }
  func.func @transform_1(%arg0: i32) -> (i32, i32) {
    %c0_i32 = arith.constant 0 : i32
    %c0_i32_0 = arith.constant 0 : i32
    %c0_i32_1 = arith.constant 0 : i32
    return %c0_i32, %c0_i32_0 : i32, i32
  }
  func.func @transform_2(%arg0: i32) -> (i32, i32) {
    %c0_i32 = arith.constant 0 : i32
    %c0_i32_0 = arith.constant 0 : i32
    %c0_i32_1 = arith.constant 0 : i32
    return %c0_i32, %c0_i32_0 : i32, i32
  }
  func.func @transform_3(%arg0: i32) -> (i32, i32) {
    %c0_i32 = arith.constant 0 : i32
    %c0_i32_0 = arith.constant 0 : i32
    %c0_i32_1 = arith.constant 0 : i32
    return %c0_i32, %c0_i32_0 : i32, i32
  }
  func.func @transform_4(%arg0: i32) -> (i32, i32) {
    %c0_i32 = arith.constant 0 : i32
    %c0_i32_0 = arith.constant 0 : i32
    %c0_i32_1 = arith.constant 0 : i32
    return %c0_i32, %c0_i32_0 : i32, i32
  }
  func.func @transform_5(%arg0: i32) -> (i32, i32) {
    %c0_i32 = arith.constant 0 : i32
    %c0_i32_0 = arith.constant 0 : i32
    %c0_i32_1 = arith.constant 0 : i32
    return %c0_i32, %c0_i32_0 : i32, i32
  }
  func.func @transform_6(%arg0: i32) -> (i32, i32) {
    %c0_i32 = arith.constant 0 : i32
    %c0_i32_0 = arith.constant 0 : i32
    %c0_i32_1 = arith.constant 0 : i32
    return %c0_i32, %c0_i32_0 : i32, i32
  }
  func.func @transform_7(%arg0: i32) -> (i32, i32) {
    %c1_i32 = arith.constant 1 : i32
    %c0_i32 = arith.constant 0 : i32
    return %c1_i32, %arg0 : i32, i32
  }
}

</mosaic_0001>

<llo_original>
// kernel: coupling_layer_forward_packed.1
$region0: #{coupling_layer_forward_packed.1}
  #allocation0 [shape = 'u32[]', space=smem, size = 0x4, offset = 0x4, fixed_abs, tag = 'smem constant byte address 0x4 - core index']
  #allocation1 [shape = 'u32[144,128]{1,0:T(1,128)}', space=vmem, size = 0x12000, scoped, tag = 'internal scratch']
  %s0 = inlined_call_operand.vmem [shape: f32[16,8], index: 0, kind: input, shape index: {}, may-alias: {0,7}]
  %s1 = inlined_call_operand.vmem [shape: bf16[64,8], index: 1, kind: input, shape index: {}]
  %s2 = inlined_call_operand.vmem [shape: f32[64,1], index: 2, kind: input, shape index: {}]
  %s3 = inlined_call_operand.vmem [shape: bf16[64,64], index: 3, kind: input, shape index: {}]
  %s4 = inlined_call_operand.vmem [shape: f32[64,1], index: 4, kind: input, shape index: {}]
  %s5 = inlined_call_operand.vmem [shape: bf16[16,64], index: 5, kind: input, shape index: {}]
  %s6 = inlined_call_operand.vmem [shape: f32[16,1], index: 6, kind: input, shape index: {}]
  %s7 = inlined_call_operand.vmem [shape: f32[16,8], index: 7, kind: output, shape index: {}, may-alias: {0,7}]
  %s8 = sld [smem:[#allocation0]]
  $region38: #{coupling_layer_forward_packed.1} parent=0
    _
  %s10 = ssub.s32 1, %s8
  %s11 = scalar_select 0, %s10, %s8
  // Predicated region
  $region2: #{coupling_layer_forward_packed.1} parent=0 // pred_check
    _
  $region3: #{coupling_layer_forward_packed.1} parent=0 // pred_check_branch
    %13 = sbr.rel (0) target = $region5
  $region4: #{coupling_layer_forward_packed.1} parent=0 // pred_region
    _
  $region5: #{coupling_layer_forward_packed.1} parent=0 // pred_fallthru
    _
  // Predicated region
  $region6: #{coupling_layer_forward_packed.1} parent=0 // pred_check
    _
  $region7: #{coupling_layer_forward_packed.1} parent=0 // pred_check_branch
    %15 = sbr.rel (0) target = $region9
  $region8: #{coupling_layer_forward_packed.1} parent=0 // pred_region
    _
  $region9: #{coupling_layer_forward_packed.1} parent=0 // pred_fallthru
    _
  // Predicated region
  $region10: #{coupling_layer_forward_packed.1} parent=0 // pred_check
    _
  $region11: #{coupling_layer_forward_packed.1} parent=0 // pred_check_branch
    %17 = sbr.rel (0) target = $region13
  $region12: #{coupling_layer_forward_packed.1} parent=0 // pred_region
    _
  $region13: #{coupling_layer_forward_packed.1} parent=0 // pred_fallthru
    _
  // Predicated region
  $region14: #{coupling_layer_forward_packed.1} parent=0 // pred_check
    _
  $region15: #{coupling_layer_forward_packed.1} parent=0 // pred_check_branch
    %19 = sbr.rel (0) target = $region17
  $region16: #{coupling_layer_forward_packed.1} parent=0 // pred_region
    _
  $region17: #{coupling_layer_forward_packed.1} parent=0 // pred_fallthru
    _
  // Predicated region
  $region18: #{coupling_layer_forward_packed.1} parent=0 // pred_check
    _
  $region19: #{coupling_layer_forward_packed.1} parent=0 // pred_check_branch
    %21 = sbr.rel (0) target = $region21
  $region20: #{coupling_layer_forward_packed.1} parent=0 // pred_region
    _
  $region21: #{coupling_layer_forward_packed.1} parent=0 // pred_fallthru
    _
  // Predicated region
  $region22: #{coupling_layer_forward_packed.1} parent=0 // pred_check
    _
  $region23: #{coupling_layer_forward_packed.1} parent=0 // pred_check_branch
    %23 = sbr.rel (0) target = $region25
  $region24: #{coupling_layer_forward_packed.1} parent=0 // pred_region
    _
  $region25: #{coupling_layer_forward_packed.1} parent=0 // pred_fallthru
    _
  // Predicated region
  $region26: #{coupling_layer_forward_packed.1} parent=0 // pred_check
    _
  $region27: #{coupling_layer_forward_packed.1} parent=0 // pred_check_branch
    %25 = sbr.rel (0) target = $region29
  $region28: #{coupling_layer_forward_packed.1} parent=0 // pred_region
    _
  $region29: #{coupling_layer_forward_packed.1} parent=0 // pred_fallthru
    _
  %s26 = scalar_lea.vmem %s7, 8
  %s27 = scalar_lea.vmem %s7, 8
  %v29 = vld [vmem:[%s0] sm:$0xff]
  %v30 = vld [vmem:[%s0 + $0x8] sm:$0xff]
  %v31 = vld [vmem:[%s1] sm:$0xf]
  %v32 = vld [vmem:[%s1 + $0x4] sm:$0xf]
  %v33 = vld [vmem:[%s1 + $0x8] sm:$0xf]
  %v34 = vld [vmem:[%s1 + $0xc] sm:$0xf]
  %v35 = vld [vmem:[%s1 + $0x10] sm:$0xf]
  %v36 = vld [vmem:[%s1 + $0x14] sm:$0xf]
  %v37 = vld [vmem:[%s1 + $0x18] sm:$0xf]
  %v38 = vld [vmem:[%s1 + $0x1c] sm:$0xf]
  %v39 = vld [vmem:[%s3] sm:$0xf]
  %v40 = vld [vmem:[%s3 + $0x4] sm:$0xf]
  %v41 = vld [vmem:[%s3 + $0x8] sm:$0xf]
  %v42 = vld [vmem:[%s3 + $0xc] sm:$0xf]
  %v43 = vld [vmem:[%s3 + $0x10] sm:$0xf]
  %v44 = vld [vmem:[%s3 + $0x14] sm:$0xf]
  %v45 = vld [vmem:[%s3 + $0x18] sm:$0xf]
  %v46 = vld [vmem:[%s3 + $0x1c] sm:$0xf]
  %v47 = vld [vmem:[%s5] sm:$0xf]
  %v48 = vld [vmem:[%s5 + $0x4] sm:$0xf]
  %v49 = vpack.c.bf16 %v29, %v29
  %v50 = vld [vmem:[%s2] sm:$0xff]
  %v51 = vld [vmem:[%s2 + $0x8] sm:$0xff]
  %v52 = vld [vmem:[%s2 + $0x10] sm:$0xff]
  %v53 = vld [vmem:[%s2 + $0x18] sm:$0xff]
  %v54 = vld [vmem:[%s2 + $0x20] sm:$0xff]
  %v55 = vld [vmem:[%s2 + $0x28] sm:$0xff]
  %v56 = vld [vmem:[%s2 + $0x30] sm:$0xff]
  %v57 = vld [vmem:[%s2 + $0x38] sm:$0xff]
  %59 = vset.pattern.permute.xlu0 0
  %60 = vperm.xlu0 %59, %v50
  %v61 = vpop.permute.xlu0 %60
  %64 = vset.pattern.permute.xlu0 0
  %65 = vperm.xlu0 %64, %v51
  %v66 = vpop.permute.xlu0 %65
  %69 = vset.pattern.permute.xlu0 0
  %70 = vperm.xlu0 %69, %v52
  %v71 = vpop.permute.xlu0 %70
  %74 = vset.pattern.permute.xlu0 0
  %75 = vperm.xlu0 %74, %v53
  %v76 = vpop.permute.xlu0 %75
  %79 = vset.pattern.permute.xlu0 0
  %80 = vperm.xlu0 %79, %v54
  %v81 = vpop.permute.xlu0 %80
  %84 = vset.pattern.permute.xlu0 0
  %85 = vperm.xlu0 %84, %v55
  %v86 = vpop.permute.xlu0 %85
  %89 = vset.pattern.permute.xlu0 0
  %90 = vperm.xlu0 %89, %v56
  %v91 = vpop.permute.xlu0 %90
  %94 = vset.pattern.permute.xlu0 0
  %95 = vperm.xlu0 %94, %v57
  %v96 = vpop.permute.xlu0 %95
  %v106 = vunpack.c.l.b16 %v31
  %v107 = vunpack.c.l.b16 %v32
  %v108 = vunpack.c.l.b16 %v33
  %v109 = vunpack.c.l.b16 %v34
  %v110 = vunpack.c.l.b16 %v35
  %v111 = vunpack.c.l.b16 %v36
  %v112 = vunpack.c.l.b16 %v37
  %v113 = vunpack.c.l.b16 %v38
  %v114 = vpack.c.b16 %v107, %v106
  %v115 = vpack.c.b16 %v109, %v108
  %v116 = vpack.c.b16 %v111, %v110
  %v117 = vpack.c.b16 %v113, %v112
  %vm118 = vcmask 64512
  %v120 = vsel %vm118, %v114, 0
  %v123 = vsel %vm118, %v115, 0
  %v126 = vsel %vm118, %v116, 0
  %v129 = vsel %vm118, %v117, 0
  %vm131 = vcmask 1043456
  %v133 = vsel %vm131, %v49, 0
  %135 = vmatprep.subr.bf16.mxu0 0
  %136 = vmatpush1.bf16.msra.mxu0 0
  %137 = vmatprep.subr.bf16.mxu0 0
  %138 = vmatpush1.bf16.msra.mxu0 0
  %139 = vmatprep.subr.bf16.mxu0 0
  %140 = vmatpush1.bf16.msra.mxu0 0
  %141 = vmatprep.subr.bf16.mxu0 0
  %142 = vmatpush1.bf16.msra.mxu0 0
  %143 = vmatprep.subr.bf16.mxu0 0
  %144 = vmatpush1.bf16.msra.mxu0 0
  %145 = vmatprep.subr.bf16.mxu0 0
  %146 = vmatpush1.bf16.msra.mxu0 0
  %147 = vmatprep.subr.bf16.mxu0 0
  %148 = vmatpush1.bf16.msra.mxu0 0
  %149 = vmatprep.subr.bf16.mxu0 0
  %150 = vmatpush1.bf16.msra.mxu0 %v133
  %151 = vmatprep.subr.bf16.mxu0 0
  %152 = vmatpush2.bf16.msra.mxu0 0
  %153 = vmatprep.subr.bf16.mxu0 0
  %154 = vmatpush2.bf16.msra.mxu0 0
  %155 = vmatprep.subr.bf16.mxu0 0
  %156 = vmatpush2.bf16.msra.mxu0 0
  %157 = vmatprep.subr.bf16.mxu0 0
  %158 = vmatpush2.bf16.msra.mxu0 0
  %159 = vmatprep.subr.bf16.mxu0 0
  %160 = vmatpush2.bf16.msra.mxu0 0
  %161 = vmatprep.subr.bf16.mxu0 0
  %162 = vmatpush2.bf16.msra.mxu0 0
  %163 = vmatprep.subr.bf16.mxu0 0
  %164 = vmatpush2.bf16.msra.mxu0 0
  %165 = vmatprep.subr.bf16.mxu0 0
  %166 = vmatpush2.bf16.msra.mxu0 0
  %167 = vmatprep.mubr.bf16.mxu0 0
  %168 = vmatmul.mubr.bf16.gmra.mxu0 %v120
  %v169 = vpop.f32.mrf.mxu0
  %v170 = vadd.f32 %v61, %v169
  %v171 = vpop.f32.mrf.mxu0
  %v172 = vpop.f32.mrf.mxu0
  %v173 = vadd.f32 %v66, %v172
  %v174 = vpop.f32.mrf.mxu0
  %175 = vmatprep.mubr.bf16.mxu0 0
  %176 = vmatmul.mubr.bf16.gmra.mxu0 %v123
  %v177 = vpop.f32.mrf.mxu0
  %v178 = vadd.f32 %v71, %v177
  %v179 = vpop.f32.mrf.mxu0
  %v180 = vpop.f32.mrf.mxu0
  %v181 = vadd.f32 %v76, %v180
  %v182 = vpop.f32.mrf.mxu0
  %183 = vmatprep.mubr.bf16.mxu0 0
  %184 = vmatmul.mubr.bf16.gmra.mxu0 %v126
  %v185 = vpop.f32.mrf.mxu0
  %v186 = vadd.f32 %v81, %v185
  %v187 = vpop.f32.mrf.mxu0
  %v188 = vpop.f32.mrf.mxu0
  %v189 = vadd.f32 %v86, %v188
  %v190 = vpop.f32.mrf.mxu0
  %191 = vmatprep.mubr.bf16.mxu0 0
  %192 = vmatmul.mubr.bf16.gmra.mxu0 %v129
  %v193 = vpop.f32.mrf.mxu0
  %v194 = vadd.f32 %v91, %v193
  %v195 = vpop.f32.mrf.mxu0
  %v196 = vpop.f32.mrf.mxu0
  %v197 = vadd.f32 %v96, %v196
  %v198 = vpop.f32.mrf.mxu0
  %199 = vdwg.mxu0
  %v200 = vmax.f32 %v170, 0.0
  %v201 = vmax.f32 %v173, 0.0
  %v202 = vmax.f32 %v178, 0.0
  %v203 = vmax.f32 %v181, 0.0
  %v204 = vmax.f32 %v186, 0.0
  %v205 = vmax.f32 %v189, 0.0
  %v206 = vmax.f32 %v194, 0.0
  %v207 = vmax.f32 %v197, 0.0
  %v208 = vpack.c.bf16 %v201, %v200
  %v209 = vpack.c.bf16 %v203, %v202
  %v210 = vpack.c.bf16 %v205, %v204
  %v211 = vpack.c.bf16 %v207, %v206
  %v212 = vld [vmem:[%s4] sm:$0xff]
  %v213 = vld [vmem:[%s4 + $0x8] sm:$0xff]
  %v214 = vld [vmem:[%s4 + $0x10] sm:$0xff]
  %v215 = vld [vmem:[%s4 + $0x18] sm:$0xff]
  %v216 = vld [vmem:[%s4 + $0x20] sm:$0xff]
  %v217 = vld [vmem:[%s4 + $0x28] sm:$0xff]
  %v218 = vld [vmem:[%s4 + $0x30] sm:$0xff]
  %v219 = vld [vmem:[%s4 + $0x38] sm:$0xff]
  %221 = vset.pattern.permute.xlu0 0
  %222 = vperm.xlu0 %221, %v212
  %v223 = vpop.permute.xlu0 %222
  %226 = vset.pattern.permute.xlu0 0
  %227 = vperm.xlu0 %226, %v213
  %v228 = vpop.permute.xlu0 %227
  %231 = vset.pattern.permute.xlu0 0
  %232 = vperm.xlu0 %231, %v214
  %v233 = vpop.permute.xlu0 %232
  %236 = vset.pattern.permute.xlu0 0
  %237 = vperm.xlu0 %236, %v215
  %v238 = vpop.permute.xlu0 %237
  %241 = vset.pattern.permute.xlu0 0
  %242 = vperm.xlu0 %241, %v216
  %v243 = vpop.permute.xlu0 %242
  %246 = vset.pattern.permute.xlu0 0
  %247 = vperm.xlu0 %246, %v217
  %v248 = vpop.permute.xlu0 %247
  %251 = vset.pattern.permute.xlu0 0
  %252 = vperm.xlu0 %251, %v218
  %v253 = vpop.permute.xlu0 %252
  %256 = vset.pattern.permute.xlu0 0
  %257 = vperm.xlu0 %256, %v219
  %v258 = vpop.permute.xlu0 %257
  %v268 = vunpack.c.l.b16 %v39
  %v269 = vunpack.c.l.b16 %v40
  %v270 = vunpack.c.l.b16 %v41
  %v271 = vunpack.c.l.b16 %v42
  %v272 = vunpack.c.l.b16 %v43
  %v273 = vunpack.c.l.b16 %v44
  %v274 = vunpack.c.l.b16 %v45
  %v275 = vunpack.c.l.b16 %v46
  %v276 = vpack.c.b16 %v269, %v268
  %v277 = vpack.c.b16 %v271, %v270
  %v278 = vpack.c.b16 %v273, %v272
  %v279 = vpack.c.b16 %v275, %v274
  %vm280 = vcmask 523264
  %v282 = vsel %vm280, %v276, 0
  %v285 = vsel %vm280, %v277, 0
  %v288 = vsel %vm280, %v278, 0
  %v291 = vsel %vm280, %v279, 0
  %293 = vmatprep.subr.bf16.mxu0 0
  %294 = vmatpush1.bf16.msra.mxu0 0
  %295 = vmatprep.subr.bf16.mxu0 0
  %296 = vmatpush1.bf16.msra.mxu0 0
  %297 = vmatprep.subr.bf16.mxu0 0
  %298 = vmatpush1.bf16.msra.mxu0 0
  %299 = vmatprep.subr.bf16.mxu0 0
  %300 = vmatpush1.bf16.msra.mxu0 0
  %301 = vmatprep.subr.bf16.mxu0 0
  %302 = vmatpush1.bf16.msra.mxu0 %v211
  %303 = vmatprep.subr.bf16.mxu0 0
  %304 = vmatpush1.bf16.msra.mxu0 %v210
  %305 = vmatprep.subr.bf16.mxu0 0
  %306 = vmatpush1.bf16.msra.mxu0 %v209
  %307 = vmatprep.subr.bf16.mxu0 0
  %308 = vmatpush1.bf16.msra.mxu0 %v208
  %309 = vmatprep.subr.bf16.mxu0 0
  %310 = vmatpush2.bf16.msra.mxu0 0
  %311 = vmatprep.subr.bf16.mxu0 0
  %312 = vmatpush2.bf16.msra.mxu0 0
  %313 = vmatprep.subr.bf16.mxu0 0
  %314 = vmatpush2.bf16.msra.mxu0 0
  %315 = vmatprep.subr.bf16.mxu0 0
  %316 = vmatpush2.bf16.msra.mxu0 0
  %317 = vmatprep.subr.bf16.mxu0 0
  %318 = vmatpush2.bf16.msra.mxu0 0
  %319 = vmatprep.subr.bf16.mxu0 0
  %320 = vmatpush2.bf16.msra.mxu0 0
  %321 = vmatprep.subr.bf16.mxu0 0
  %322 = vmatpush2.bf16.msra.mxu0 0
  %323 = vmatprep.subr.bf16.mxu0 0
  %324 = vmatpush2.bf16.msra.mxu0 0
  %325 = vmatprep.mubr.bf16.mxu0 0
  %326 = vmatmul.mubr.bf16.gmra.mxu0 %v282
  %v327 = vpop.f32.mrf.mxu0
  %v328 = vadd.f32 %v223, %v327
  %v329 = vpop.f32.mrf.mxu0
  %v330 = vpop.f32.mrf.mxu0
  %v331 = vadd.f32 %v228, %v330
  %v332 = vpop.f32.mrf.mxu0
  %333 = vmatprep.mubr.bf16.mxu0 0
  %334 = vmatmul.mubr.bf16.gmra.mxu0 %v285
  %v335 = vpop.f32.mrf.mxu0
  %v336 = vadd.f32 %v233, %v335
  %v337 = vpop.f32.mrf.mxu0
  %v338 = vpop.f32.mrf.mxu0
  %v339 = vadd.f32 %v238, %v338
  %v340 = vpop.f32.mrf.mxu0
  %341 = vmatprep.mubr.bf16.mxu0 0
  %342 = vmatmul.mubr.bf16.gmra.mxu0 %v288
  %v343 = vpop.f32.mrf.mxu0
  %v344 = vadd.f32 %v243, %v343
  %v345 = vpop.f32.mrf.mxu0
  %v346 = vpop.f32.mrf.mxu0
  %v347 = vadd.f32 %v248, %v346
  %v348 = vpop.f32.mrf.mxu0
  %349 = vmatprep.mubr.bf16.mxu0 0
  %350 = vmatmul.mubr.bf16.gmra.mxu0 %v291
  %v351 = vpop.f32.mrf.mxu0
  %v352 = vadd.f32 %v253, %v351
  %v353 = vpop.f32.mrf.mxu0
  %v354 = vpop.f32.mrf.mxu0
  %v355 = vadd.f32 %v258, %v354
  %v356 = vpop.f32.mrf.mxu0
  %357 = vdwg.mxu0
  %v358 = vmax.f32 %v328, 0.0
  %v359 = vmax.f32 %v331, 0.0
  %v360 = vmax.f32 %v336, 0.0
  %v361 = vmax.f32 %v339, 0.0
  %v362 = vmax.f32 %v344, 0.0
  %v363 = vmax.f32 %v347, 0.0
  %v364 = vmax.f32 %v352, 0.0
  %v365 = vmax.f32 %v355, 0.0
  %v366 = vpack.c.bf16 %v359, %v358
  %v367 = vpack.c.bf16 %v361, %v360
  %v368 = vpack.c.bf16 %v363, %v362
  %v369 = vpack.c.bf16 %v365, %v364
  %v370 = vld [vmem:[%s6] sm:$0xff]
  %v371 = vld [vmem:[%s6 + $0x8] sm:$0xff]
  %373 = vset.pattern.permute.xlu0 0
  %374 = vperm.xlu0 %373, %v370
  %v375 = vpop.permute.xlu0 %374
  %378 = vset.pattern.permute.xlu0 0
  %379 = vperm.xlu0 %378, %v371
  %v380 = vpop.permute.xlu0 %379
  %v384 = vunpack.c.l.b16 %v47
  %v385 = vunpack.c.l.b16 %v48
  %v386 = vpack.c.b16 %v385, %v384
  %v388 = vsel %vm280, %v386, 0
  %390 = vmatprep.subr.bf16.mxu0 0
  %391 = vmatpush1.bf16.msra.mxu0 0
  %392 = vmatprep.subr.bf16.mxu0 0
  %393 = vmatpush1.bf16.msra.mxu0 0
  %394 = vmatprep.subr.bf16.mxu0 0
  %395 = vmatpush1.bf16.msra.mxu0 0
  %396 = vmatprep.subr.bf16.mxu0 0
  %397 = vmatpush1.bf16.msra.mxu0 0
  %398 = vmatprep.subr.bf16.mxu0 0
  %399 = vmatpush1.bf16.msra.mxu0 %v369
  %400 = vmatprep.subr.bf16.mxu0 0
  %401 = vmatpush1.bf16.msra.mxu0 %v368
  %402 = vmatprep.subr.bf16.mxu0 0
  %403 = vmatpush1.bf16.msra.mxu0 %v367
  %404 = vmatprep.subr.bf16.mxu0 0
  %405 = vmatpush1.bf16.msra.mxu0 %v366
  %406 = vmatprep.subr.bf16.mxu0 0
  %407 = vmatpush2.bf16.msra.mxu0 0
  %408 = vmatprep.subr.bf16.mxu0 0
  %409 = vmatpush2.bf16.msra.mxu0 0
  %410 = vmatprep.subr.bf16.mxu0 0
  %411 = vmatpush2.bf16.msra.mxu0 0
  %412 = vmatprep.subr.bf16.mxu0 0
  %413 = vmatpush2.bf16.msra.mxu0 0
  %414 = vmatprep.subr.bf16.mxu0 0
  %415 = vmatpush2.bf16.msra.mxu0 0
  %416 = vmatprep.subr.bf16.mxu0 0
  %417 = vmatpush2.bf16.msra.mxu0 0
  %418 = vmatprep.subr.bf16.mxu0 0
  %419 = vmatpush2.bf16.msra.mxu0 0
  %420 = vmatprep.subr.bf16.mxu0 0
  %421 = vmatpush2.bf16.msra.mxu0 0
  %422 = vmatprep.mubr.bf16.mxu0 0
  %423 = vmatmul.mubr.bf16.gmra.mxu0 %v388
  %v424 = vpop.f32.mrf.mxu0
  %v425 = vadd.f32 %v375, %v424
  %v426 = vpop.f32.mrf.mxu0
  %v427 = vpop.f32.mrf.mxu0
  %v428 = vadd.f32 %v380, %v427
  %v429 = vpop.f32.mrf.mxu0
  %430 = vdwg.mxu0
  %v431 = vtanh.pop %v428
  %v432 = vmul.f32 %v431, 1.442695
  %v433 = vpow.pop %v432
  %v434 = vmul.f32 %v30, %v433
  %v435 = vadd.f32 %v434, %v425
  %436 = vst.msk [vmem:[%s27] sm:$0xff] %vm118, %v435
  %s437 = scalar_lea.vmem %s7, 8
  // Predicated region
  $region30: #{coupling_layer_forward_packed.1} parent=0 // pred_check
    _
  $region31: #{coupling_layer_forward_packed.1} parent=0 // pred_check_branch
    %439 = sbr.rel (0) target = $region33
  $region32: #{coupling_layer_forward_packed.1} parent=0 // pred_region
    _
  $region33: #{coupling_layer_forward_packed.1} parent=0 // pred_fallthru
    _
  // Predicated region
  $region34: #{coupling_layer_forward_packed.1} parent=0 // pred_check
    _
  $region35: #{coupling_layer_forward_packed.1} parent=0 // pred_check_branch
    %441 = sbr.rel (0) target = $region37
  $region36: #{coupling_layer_forward_packed.1} parent=0 // pred_region
    %s442 = scalar_lea.vmem %s7, 8
  $region37: #{coupling_layer_forward_packed.1} parent=0 // pred_fallthru
    _

</llo_original>
